<compile_context>
chip_gen: v7x
topology: tpu7x:2x2x1
jax: 0.10.0
libtpu: 0.0.40
codegen_flags: <defaults>
</compile_context>

<pallas_src>
import functools

import jax
import jax.numpy as jnp
from jax.experimental import pallas as pl
from jax.experimental.pallas import tpu as pltpu


_TB_DEFAULT_CAP = 2048                       # review: 1024-2048 row tiles
_VMEM_FOOTPRINT_TARGET = 30 * 1024 * 1024    # per-step footprint target (v7x-safe)


def _round_up(x, m):
    return (x + m - 1) // m * m


def _realnvp_fwd_kernel(x_ref, w1_ref, b1_ref, w2_ref, b2_ref,
                        z_ref, ld_ref, *, half, write_x1):
    """One batch tile: z2 = x2*exp(s)+t; log_det folded into the MXU output."""
    mm_dtype = w1_ref.dtype
    x1 = x_ref[:, :half]                       # [TB, half]
    x2 = x_ref[:, half:]                       # [TB, half]

    # Fused s/t first layer (hidden width padded to a multiple of 128): one MXU push.
    h = jnp.dot(x1.astype(mm_dtype), w1_ref[...],
                preferred_element_type=jnp.float32) + b1_ref[...]     # [TB, 2Hp]
    h = jnp.maximum(h, 0.0)

    # Fused block-diagonal second layer, output columns = [ s | t | log_det | 0-pad ].
    # The extra column is w2s @ 1 (plus sum(b2s)), so the row-sum of s rides the
    # MXU for free -- no XLU reduce, no 128-lane broadcast store.
    st = jnp.dot(h.astype(mm_dtype), w2_ref[...],
                 preferred_element_type=jnp.float32) + b2_ref[...]    # [TB, OUTC]
    s = st[:, :half]
    t = st[:, half:2 * half]

    z2 = x2 * jnp.exp(s) + t
    if write_x1:
        # Generic path (half not lane-aligned): write the whole row.
        z_ref[:, :half] = x1
        z_ref[:, half:] = z2
    else:
        # x is aliased onto z, so the first-half columns already hold x1; only
        # the second half is written (halves z's HBM write traffic).
        z_ref[...] = z2

    ld_ref[...] = st[:, 2 * half:2 * half + 1]                        # [TB, 1]


class RealNVPPallas:
    """RealNVP affine-coupling forward (reverse=False) as a fused Pallas TPU kernel."""

    def __init__(self, input_dim, hidden_dim, key=None, matmul_dtype=jnp.float32):
        assert input_dim % 2 == 0, "Input dimension must be divisible by 2"
        self.input_dim = input_dim
        self.hidden_dim = hidden_dim
        # matmul_dtype=jnp.bfloat16 pre-casts the fused weights at init (halved
        # weight DMA + native-bf16 MXU); default stays f32 for tight parity with
        # the f32 reference since exp(s) amplifies bf16 matmul error.
        self.matmul_dtype = matmul_dtype
        half = input_dim // 2
        if key is None:
            key = jax.random.PRNGKey(0)
        ks = jax.random.split(key, 8)

        def uinit(k, shape, fan_in):
            bound = 1.0 / jnp.sqrt(fan_in)
            return jax.random.uniform(k, shape, jnp.float32, -bound, bound)

        # Per-net parameters ([in, out] so the kernel does x @ W == PyTorch x @ W.T).
        self.w1s = uinit(ks[0], (half, hidden_dim), half)
        self.b1s = uinit(ks[1], (1, hidden_dim), half)
        self.w2s = uinit(ks[2], (hidden_dim, half), hidden_dim)
        self.b2s = uinit(ks[3], (1, half), hidden_dim)
        self.w1t = uinit(ks[4], (half, hidden_dim), half)
        self.b1t = uinit(ks[5], (1, hidden_dim), half)
        self.w2t = uinit(ks[6], (hidden_dim, half), hidden_dim)
        self.b2t = uinit(ks[7], (1, half), hidden_dim)

        # Fused + padded weights for the kernel:
        #   layer 1: [half, 2Hp]  (s cols | t cols | zero pad)  -> one matmul
        #   layer 2: block-diag [2Hp, OUTC], OUTC = roundup(2*half+1, 128)
        #            output columns = [ s | t | log_det | zero pad ]
        # Zero padding is numerically exact (ReLU(0)=0, zero rows contribute 0).
        H, H2 = hidden_dim, 2 * hidden_dim
        H2p = _round_up(H2, 128)
        outc = _round_up(2 * half + 1, 128)
        self.hidden_pad = H2p
        self.out_cols = outc

        w1 = jnp.zeros((half, H2p), jnp.float32)
        w1 = w1.at[:, :H].set(self.w1s).at[:, H:H2].set(self.w1t)
        b1 = jnp.zeros((1, H2p), jnp.float32)
        b1 = b1.at[:, :H].set(self.b1s).at[:, H:H2].set(self.b1t)

        w2 = jnp.zeros((H2p, outc), jnp.float32)
        w2 = w2.at[:H, :half].set(self.w2s)
        w2 = w2.at[H:H2, half:2 * half].set(self.w2t)
        # log-det fold: extra column = row-sums of w2s (s-block rows only)
        w2 = w2.at[:H, 2 * half].set(jnp.sum(self.w2s, axis=1))
        b2 = jnp.zeros((1, outc), jnp.float32)
        b2 = b2.at[:, :half].set(self.b2s).at[:, half:2 * half].set(self.b2t)
        b2 = b2.at[0, 2 * half].set(jnp.sum(self.b2s))

        self.w1 = w1.astype(matmul_dtype)
        self.w2 = w2.astype(matmul_dtype)
        self.b1 = b1   # biases stay f32 (added to the f32 accumulator)
        self.b2 = b2

    def forward(self, x, block_b=None):
        # glue: flatten like torch's x.view(B, -1)
        if x.ndim > 2:
            x = x.reshape(x.shape[0], -1)
        x = x.astype(jnp.float32)
        B, D = x.shape
        assert D == self.input_dim
        half = D // 2
        H2p, outc = self.hidden_pad, self.out_cols

        # Lane-aligned half -> alias x onto z and only write the second-half cols.
        write_x1 = (half % 128) != 0
        z_cols = D if write_x1 else half

        # ---- batch-tile selection (footprint-derived, v7x 64 MiB safe) ----
        B8 = _round_up(B, 8)
        wt_isz = self.w1.dtype.itemsize
        w_bytes = (self.w1.size + self.w2.size) * wt_isz + (self.b1.size + self.b2.size) * 4
        # per-row VMEM: double-buffered x/z/ld blocks + single-copy h/st intermediates
        row_bytes = 4 * (2 * (D + z_cols + 1) + H2p + outc)
        tb_cap = _TB_DEFAULT_CAP if block_b is None else max(8, _round_up(block_b, 8))
        tb_vmem = max(8, int((_VMEM_FOOTPRINT_TARGET - 2 * w_bytes) // row_bytes) // 8 * 8)
        TB = max(8, min(tb_cap, tb_vmem, B8))
        # force grid >= 2 when possible so v7x's two TensorCores both get work
        if B8 >= 16 and TB >= B8:
            TB = max(8, (B8 // 2) // 8 * 8)
        # prefer a TB that divides B8 (no batch padding -> no wrapper-side z[:B]
        # copy pass), but never shrink the tile by more than 2x for it
        d = TB // 8
        while d > 1 and (B8 // 8) % d != 0:
            d -= 1
        if d * 8 * 2 >= TB:
            TB = d * 8
        B_pad = _round_up(B8, TB)

        if B_pad != B:
            x = jnp.pad(x, ((0, B_pad - B), (0, 0)))
        grid = (B_pad // TB,)

        footprint = TB * row_bytes + 2 * w_bytes
        vmem_limit = int(min(56 * 1024 * 1024,
                             max(16 * 1024 * 1024, (footprint * 3) // 2)))

        x_spec = pl.BlockSpec((TB, D), lambda i: (i, 0))
        if write_x1:
            z_spec = pl.BlockSpec((TB, D), lambda i: (i, 0))
            io_aliases = {}
        else:
            # z block covers only the second-half columns; the first half keeps
            # the aliased x contents (must-alias => output buffer holds x).
            z_spec = pl.BlockSpec((TB, half), lambda i: (i, 1))
            io_aliases = {0: 0}
        ld_spec = pl.BlockSpec((TB, 1), lambda i: (i, 0))
        # Weights/biases: constant index_map -> stay VMEM-resident across the grid.
        const = lambda shape: pl.BlockSpec(shape, lambda i: (0, 0))

        # Executed-cost estimate (dense matmuls as run on the MXU).
        flops = 2 * B_pad * half * H2p + 2 * B_pad * H2p * outc
        bytes_accessed = (4 * B_pad * D            # x read
                          + 4 * B_pad * z_cols     # z write
                          + 4 * B_pad              # log-det write
                          + w_bytes)               # weights read once

        kernel = functools.partial(_realnvp_fwd_kernel, half=half, write_x1=write_x1)

        z, ld = pl.pallas_call(
            kernel,
            out_shape=(
                jax.ShapeDtypeStruct((B_pad, D), jnp.float32),
                jax.ShapeDtypeStruct((B_pad, 1), jnp.float32),
            ),
            grid=grid,
            in_specs=[
                x_spec,
                const(self.w1.shape), const(self.b1.shape),
                const(self.w2.shape), const(self.b2.shape),
            ],
            out_specs=(z_spec, ld_spec),
            input_output_aliases=io_aliases,
            compiler_params=pltpu.CompilerParams(
                dimension_semantics=("parallel",),
                vmem_limit_bytes=vmem_limit,
            ),
            cost_estimate=pl.CostEstimate(
                flops=flops,
                transcendentals=B_pad * half,
                bytes_accessed=bytes_accessed,
            ),
        )(x, self.w1, self.b1, self.w2, self.b2)

        if B_pad != B:
            z = z[:B]
            ld = ld[:B]
        return z, ld[:, 0]   # log_det shape [B], matching torch

    # pure-JAX reference (mirrors the PyTorch module) for validation
    def forward_ref(self, x):
        if x.ndim > 2:
            x = x.reshape(x.shape[0], -1)
        half = self.input_dim // 2
        x1, x2 = x[:, :half], x[:, half:]
        s = jnp.maximum(x1 @ self.w1s + self.b1s, 0.0) @ self.w2s + self.b2s
        t = jnp.maximum(x1 @ self.w1t + self.b1t, 0.0) @ self.w2t + self.b2t
        z2 = x2 * jnp.exp(s) + t
        return jnp.concatenate([x1, z2], axis=1), jnp.sum(s, axis=1)


if __name__ == "__main__":
    # x: [B, C, H, W] -> flattened to input_dim = C*H*W inside forward()
    B, C, H, W = 16, 4, 8, 8
    input_dim = C * H * W        # 256  (half = 128: lane-aligned -> aliased z path)
    hidden_dim = 32

    key = jax.random.PRNGKey(0)
    kx, kp = jax.random.split(key)
    x = jax.random.normal(kx, (B, C, H, W), jnp.float32)

    model = RealNVPPallas(input_dim, hidden_dim, key=kp)

    # TB heuristic gives TB=8, grid=(2,): exercises the batch pipeline,
    # the parallel axis and the aliased half-column z store.
    z, log_det = model.forward(x)
    jax.block_until_ready((z, log_det))

    z_ref, ld_ref = model.forward_ref(x)
    assert z.shape == (B, input_dim) and log_det.shape == (B,)
    assert jnp.allclose(z, z_ref, atol=5e-4, rtol=5e-4)
    assert jnp.allclose(log_det, ld_ref, atol=5e-4, rtol=5e-4)

    print("KERNEL_OK")
</pallas_src>

<mosaic_0001>
module attributes {stable_mosaic.version = 11 : i64} {
  func.func @_realnvp_fwd_kernel(%arg0: i32, %arg1: memref<8x256xf32, #tpu.memory_space<vmem>>, %arg2: memref<128x128xf32, #tpu.memory_space<vmem>>, %arg3: memref<1x128xf32, #tpu.memory_space<vmem>>, %arg4: memref<128x384xf32, #tpu.memory_space<vmem>>, %arg5: memref<1x384xf32, #tpu.memory_space<vmem>>, %arg6: memref<8x128xf32, #tpu.memory_space<vmem>>, %arg7: memref<8x1xf32, #tpu.memory_space<vmem>>) attributes {dimension_semantics = [#tpu.dimension_semantics<parallel>], iteration_bounds = array<i64: 2>, scalar_prefetch = 0 : i64, scratch_operands = 0 : i64, tpu.core_type = #tpu.core_type<tc>, window_params = [{transform_indices = @transform_0, window_bounds = array<i64: 8, 256>}, {pipeline_mode = #tpu.pipeline_mode<synchronous>, transform_indices = @transform_1, window_bounds = array<i64: 128, 128>}, {pipeline_mode = #tpu.pipeline_mode<synchronous>, transform_indices = @transform_2, window_bounds = array<i64: 1, 128>}, {pipeline_mode = #tpu.pipeline_mode<synchronous>, transform_indices = @transform_3, window_bounds = array<i64: 128, 384>}, {pipeline_mode = #tpu.pipeline_mode<synchronous>, transform_indices = @transform_4, window_bounds = array<i64: 1, 384>}, {transform_indices = @transform_5, window_bounds = array<i64: 8, 128>}, {transform_indices = @transform_6, window_bounds = array<i64: 8, 1>}]} {
    %c0 = arith.constant 0 : index
    %c0_0 = arith.constant 0 : index
    %0 = vector.load %arg1[%c0, %c0_0] : memref<8x256xf32, #tpu.memory_space<vmem>>, vector<8x128xf32>
    %c0_1 = arith.constant 0 : index
    %c128 = arith.constant 128 : index
    %1 = vector.load %arg1[%c0_1, %c128] : memref<8x256xf32, #tpu.memory_space<vmem>>, vector<8x128xf32>
    %c0_2 = arith.constant 0 : index
    %c0_3 = arith.constant 0 : index
    %2 = vector.load %arg2[%c0_2, %c0_3] : memref<128x128xf32, #tpu.memory_space<vmem>>, vector<128x128xf32>
    %cst = arith.constant dense<0.000000e+00> : vector<8x128xf32>
    %3 = tpu.matmul %0, %2, %cst {dimension_numbers = #tpu.dot_dimension_numbers<[1], [0], [0], [1], [0, 0, 1, 1], [], []>} : vector<8x128xf32>, vector<128x128xf32>, vector<8x128xf32> -> vector<8x128xf32>
    %c0_4 = arith.constant 0 : index
    %c0_5 = arith.constant 0 : index
    %4 = vector.load %arg3[%c0_4, %c0_5] : memref<1x128xf32, #tpu.memory_space<vmem>>, vector<1x128xf32>
    %5 = vector.broadcast %4 : vector<1x128xf32> to vector<8x128xf32>
    %6 = arith.addf %3, %5 : vector<8x128xf32>
    %cst_6 = arith.constant 0.000000e+00 : f32
    %7 = vector.broadcast %cst_6 : f32 to vector<8x128xf32>
    %8 = arith.maximumf %6, %7 : vector<8x128xf32>
    %c0_7 = arith.constant 0 : index
    %c0_8 = arith.constant 0 : index
    %9 = vector.load %arg4[%c0_7, %c0_8] : memref<128x384xf32, #tpu.memory_space<vmem>>, vector<128x384xf32>
    %cst_9 = arith.constant dense<0.000000e+00> : vector<8x384xf32>
    %10 = tpu.matmul %8, %9, %cst_9 {dimension_numbers = #tpu.dot_dimension_numbers<[1], [0], [0], [1], [0, 0, 1, 1], [], []>} : vector<8x128xf32>, vector<128x384xf32>, vector<8x384xf32> -> vector<8x384xf32>
    %c0_10 = arith.constant 0 : index
    %c0_11 = arith.constant 0 : index
    %11 = vector.load %arg5[%c0_10, %c0_11] : memref<1x384xf32, #tpu.memory_space<vmem>>, vector<1x384xf32>
    %12 = vector.broadcast %11 : vector<1x384xf32> to vector<8x384xf32>
    %13 = arith.addf %10, %12 : vector<8x384xf32>
    %14 = vector.extract_strided_slice %13 {offsets = [0, 0], sizes = [8, 128], strides = [1, 1]} : vector<8x384xf32> to vector<8x128xf32>
    %15 = vector.extract_strided_slice %13 {offsets = [0, 128], sizes = [8, 128], strides = [1, 1]} : vector<8x384xf32> to vector<8x128xf32>
    %16 = math.exp %14 : vector<8x128xf32>
    %17 = arith.mulf %1, %16 : vector<8x128xf32>
    %18 = arith.addf %17, %15 : vector<8x128xf32>
    %c0_12 = arith.constant 0 : index
    %c0_13 = arith.constant 0 : index
    %19 = vector.load %arg6[%c0_12, %c0_13] : memref<8x128xf32, #tpu.memory_space<vmem>>, vector<8x128xf32>
    tpu.vector_store %arg6[%c0_12, %c0_13], %18 {strides = array<i32>} : memref<8x128xf32, #tpu.memory_space<vmem>>, vector<8x128xf32>,
    %20 = vector.extract_strided_slice %13 {offsets = [0, 256], sizes = [8, 1], strides = [1, 1]} : vector<8x384xf32> to vector<8x1xf32>
    %c0_14 = arith.constant 0 : index
    %c0_15 = arith.constant 0 : index
    %21 = vector.load %arg7[%c0_14, %c0_15] : memref<8x1xf32, #tpu.memory_space<vmem>>, vector<8x1xf32>
    tpu.vector_store %arg7[%c0_14, %c0_15], %20 {strides = array<i32>} : memref<8x1xf32, #tpu.memory_space<vmem>>, vector<8x1xf32>,
    return
  }
  func.func @transform_0(%arg0: i32) -> (i32, i32) {
    %c0_i32 = arith.constant 0 : i32
    %c0_i32_0 = arith.constant 0 : i32
    return %arg0, %c0_i32 : i32, i32
  }
  func.func @transform_1(%arg0: i32) -> (i32, i32) {
    %c0_i32 = arith.constant 0 : i32
    %c0_i32_0 = arith.constant 0 : i32
    %c0_i32_1 = arith.constant 0 : i32
    return %c0_i32, %c0_i32_0 : i32, i32
  }
  func.func @transform_2(%arg0: i32) -> (i32, i32) {
    %c0_i32 = arith.constant 0 : i32
    %c0_i32_0 = arith.constant 0 : i32
    %c0_i32_1 = arith.constant 0 : i32
    return %c0_i32, %c0_i32_0 : i32, i32
  }
  func.func @transform_3(%arg0: i32) -> (i32, i32) {
    %c0_i32 = arith.constant 0 : i32
    %c0_i32_0 = arith.constant 0 : i32
    %c0_i32_1 = arith.constant 0 : i32
    return %c0_i32, %c0_i32_0 : i32, i32
  }
  func.func @transform_4(%arg0: i32) -> (i32, i32) {
    %c0_i32 = arith.constant 0 : i32
    %c0_i32_0 = arith.constant 0 : i32
    %c0_i32_1 = arith.constant 0 : i32
    return %c0_i32, %c0_i32_0 : i32, i32
  }
  func.func @transform_5(%arg0: i32) -> (i32, i32) {
    %c1_i32 = arith.constant 1 : i32
    %c0_i32 = arith.constant 0 : i32
    return %arg0, %c1_i32 : i32, i32
  }
  func.func @transform_6(%arg0: i32) -> (i32, i32) {
    %c0_i32 = arith.constant 0 : i32
    %c0_i32_0 = arith.constant 0 : i32
    return %arg0, %c0_i32 : i32, i32
  }
}

</mosaic_0001>

<llo_original>
// kernel: tpu_custom_call.1
$region0: #{tpu_custom_call.1}
  #allocation0 [shape = 'u32[]', space=smem, size = 0x4, offset = 0x4, fixed_abs, tag = 'smem constant byte address 0x4 - core index']
  #allocation1 [shape = 'u32[144,128]{1,0:T(1,128)}', space=vmem, size = 0x12000, scoped, tag = 'internal scratch']
  %s0 = inlined_call_operand.vmem [shape: f32[16,256], index: 0, kind: input, shape index: {}, may-alias: {0,5}]
  %s1 = inlined_call_operand.hbm [shape: f32[128,128], index: 1, kind: input, shape index: {}]
  %s2 = inlined_call_operand.vmem [shape: f32[1,128], index: 2, kind: input, shape index: {}]
  %s3 = inlined_call_operand.hbm [shape: f32[128,384], index: 3, kind: input, shape index: {}]
  %s4 = inlined_call_operand.vmem [shape: f32[1,384], index: 4, kind: input, shape index: {}]
  %s5 = inlined_call_operand.vmem [shape: f32[16,256], index: 5, kind: output, shape index: {0}, may-alias: {0,5}]
  %s6 = inlined_call_operand.vmem [shape: f32[16,1], index: 6, kind: output, shape index: {1}]
  %7 = xla_tuple %s5, %s6
  %s8 = sld [smem:[#allocation0]]
  $region69: #{tpu_custom_call.1} parent=0
    _
  %s10 = ssub.s32 1, %s8
  %s11 = scalar_select 0, %s10, %s8
  $region1: #{tpu_custom_call.1} parent=0
    #allocation2 [shape = 'u8[65536]{0}', space=vmem, size = 0x10000, scoped, tag = 'input window, operand 1, single buffered']
    #allocation3 [shape = 's32[2]{0}', space=sflag, size = 0x8, scoped, tag = 'scoped memory for tpu_custom_call.1']
    #allocation4 [shape = 'u8[196608]{0}', space=vmem, size = 0x30000, scoped, tag = 'input window, operand 3, single buffered']
    #allocation5 [shape = 's32[1]{0}', space=sflag, size = 0x4, scoped, tag = 'scoped memory for tpu_custom_call.1']
    %12 = vsyncpa [#allocation3], 0
    %13 = vsyncpa [#allocation5], 0
    loop: start=0, step=1, limit=4
    $region2: #{tpu_custom_call.1} parent=1 // loop_pre_header
      _
    $region3: #{tpu_custom_call.1} parent=1 // loop_header
      %s15 = sphi 0, %s19
      %p16 = scmp.ge.s32.totalorder %s15, 4
      %s25 = sphi 0, %s27
      %s28 = sphi 0, %s25
      %s29 = sphi 0, %s28
      %s45 = sphi 0, %s29
      %s49 = sphi 0, %s49
      %s51 = sphi 0, %s49
      %s52 = sphi 0, %s51
      %s66 = sphi 0, %s52
      %s70 = sphi 0, %s70
      %s72 = sphi 0, %s70
      %s73 = sphi 0, %s72
      %s87 = sphi 0, %s73
      %s91 = sphi 0, %s91
      %s93 = sphi 0, %s91
      %s94 = sphi 0, %s93
      %s108 = sphi 0, %s94
      %s112 = sphi 0, %s112
      %s114 = sphi 0, %s112
      %s115 = sphi 0, %s114
      %s129 = sphi 0, %s115
      %s135 = sphi 0, %s137
      %s138 = sphi 0, %s135
      %s139 = sphi 0, %s138
      %s155 = sphi 0, %s139
      %s161 = sphi 0, %s163
      %s164 = sphi 0, %s161
      %s165 = sphi 0, %s164
      %s181 = sphi 0, %s165
    $region4: #{tpu_custom_call.1} parent=1 // loop_header_branch
      %18 = sbr.rel (%p16) target = $region8
    $region5: #{tpu_custom_call.1} parent=1 // loop_body
      %s20 = ssub.s32 %s15, 1
      %s21 = ssub.s32 %s15, 2
      %s22 = sadd.s32 %s15, 1
      %s23 = ssub.s32 %s15, %s22
      %p24 = scmp.eq.s32.totalorder %s23, 0
      %s26 = sadd.s32 %s25, 1
      %s27 = scalar_select %p24, %s25, %s26
      %p30 = pneg %p24
      %p31 = scmp.eq.s32.totalorder %s15, 1
      %p32 = por %p30, %p31
      %p33 = scmp.ne.s32.totalorder %s25, %s28
      %p34 = scmp.eq.s32.totalorder %s15, 0
      %p35 = por %p33, %p34
      %p36 = scmp.ne.s32.totalorder %s25, %s28
      %p37 = scmp.eq.s32.totalorder %s20, 1
      %p38 = por %p36, %p37
      %p39 = scmp.ne.s32.totalorder %s28, %s29
      %p40 = scmp.eq.s32.totalorder %s20, 0
      %p41 = por %p39, %p40
      %p42 = scmp.ne.s32.totalorder %s28, %s29
      %p43 = scmp.eq.s32.totalorder %s21, 1
      %p44 = por %p42, %p43
      %p46 = scmp.ne.s32.totalorder %s29, %s45
      %p47 = scmp.eq.s32.totalorder %s21, 0
      %p48 = por %p46, %p47
      %s50 = sadd.s32 %s49, 1
      %p53 = scmp.eq.s32.totalorder %s15, 1
      %p54 = scmp.ne.s32.totalorder %s49, %s51
      %p55 = scmp.eq.s32.totalorder %s15, 0
      %p56 = por %p54, %p55
      %p57 = scmp.ne.s32.totalorder %s49, %s51
      %p58 = scmp.eq.s32.totalorder %s20, 1
      %p59 = por %p57, %p58
      %p60 = scmp.ne.s32.totalorder %s51, %s52
      %p61 = scmp.eq.s32.totalorder %s20, 0
      %p62 = por %p60, %p61
      %p63 = scmp.ne.s32.totalorder %s51, %s52
      %p64 = scmp.eq.s32.totalorder %s21, 1
      %p65 = por %p63, %p64
      %p67 = scmp.ne.s32.totalorder %s52, %s66
      %p68 = scmp.eq.s32.totalorder %s21, 0
      %p69 = por %p67, %p68
      %s71 = sadd.s32 %s70, 1
      %p74 = scmp.eq.s32.totalorder %s15, 1
      %p75 = scmp.ne.s32.totalorder %s70, %s72
      %p76 = scmp.eq.s32.totalorder %s15, 0
      %p77 = por %p75, %p76
      %p78 = scmp.ne.s32.totalorder %s70, %s72
      %p79 = scmp.eq.s32.totalorder %s20, 1
      %p80 = por %p78, %p79
      %p81 = scmp.ne.s32.totalorder %s72, %s73
      %p82 = scmp.eq.s32.totalorder %s20, 0
      %p83 = por %p81, %p82
      %p84 = scmp.ne.s32.totalorder %s72, %s73
      %p85 = scmp.eq.s32.totalorder %s21, 1
      %p86 = por %p84, %p85
      %p88 = scmp.ne.s32.totalorder %s73, %s87
      %p89 = scmp.eq.s32.totalorder %s21, 0
      %p90 = por %p88, %p89
      %s92 = sadd.s32 %s91, 1
      %p95 = scmp.eq.s32.totalorder %s15, 1
      %p96 = scmp.ne.s32.totalorder %s91, %s93
      %p97 = scmp.eq.s32.totalorder %s15, 0
      %p98 = por %p96, %p97
      %p99 = scmp.ne.s32.totalorder %s91, %s93
      %p100 = scmp.eq.s32.totalorder %s20, 1
      %p101 = por %p99, %p100
      %p102 = scmp.ne.s32.totalorder %s93, %s94
      %p103 = scmp.eq.s32.totalorder %s20, 0
      %p104 = por %p102, %p103
      %p105 = scmp.ne.s32.totalorder %s93, %s94
      %p106 = scmp.eq.s32.totalorder %s21, 1
      %p107 = por %p105, %p106
      %p109 = scmp.ne.s32.totalorder %s94, %s108
      %p110 = scmp.eq.s32.totalorder %s21, 0
      %p111 = por %p109, %p110
      %s113 = sadd.s32 %s112, 1
      %p116 = scmp.eq.s32.totalorder %s15, 1
      %p117 = scmp.ne.s32.totalorder %s112, %s114
      %p118 = scmp.eq.s32.totalorder %s15, 0
      %p119 = por %p117, %p118
      %p120 = scmp.ne.s32.totalorder %s112, %s114
      %p121 = scmp.eq.s32.totalorder %s20, 1
      %p122 = por %p120, %p121
      %p123 = scmp.ne.s32.totalorder %s114, %s115
      %p124 = scmp.eq.s32.totalorder %s20, 0
      %p125 = por %p123, %p124
      %p126 = scmp.ne.s32.totalorder %s114, %s115
      %p127 = scmp.eq.s32.totalorder %s21, 1
      %p128 = por %p126, %p127
      %p130 = scmp.ne.s32.totalorder %s115, %s129
      %p131 = scmp.eq.s32.totalorder %s21, 0
      %p132 = por %p130, %p131
      %s133 = ssub.s32 %s15, %s22
      %p134 = scmp.eq.s32.totalorder %s133, 0
      %s136 = sadd.s32 %s135, 1
      %s137 = scalar_select %p134, %s135, %s136
      %p140 = pneg %p134
      %p141 = scmp.eq.s32.totalorder %s15, 1
      %p142 = por %p140, %p141
      %p143 = scmp.ne.s32.totalorder %s135, %s138
      %p144 = scmp.eq.s32.totalorder %s15, 0
      %p145 = por %p143, %p144
      %p146 = scmp.ne.s32.totalorder %s135, %s138
      %p147 = scmp.eq.s32.totalorder %s20, 1
      %p148 = por %p146, %p147
      %p149 = scmp.ne.s32.totalorder %s138, %s139
      %p150 = scmp.eq.s32.totalorder %s20, 0
      %p151 = por %p149, %p150
      %p152 = scmp.ne.s32.totalorder %s138, %s139
      %p153 = scmp.eq.s32.totalorder %s21, 1
      %p154 = por %p152, %p153
      %p156 = scmp.ne.s32.totalorder %s139, %s155
      %p157 = scmp.eq.s32.totalorder %s21, 0
      %p158 = por %p156, %p157
      %s159 = ssub.s32 %s15, %s22
      %p160 = scmp.eq.s32.totalorder %s159, 0
      %s162 = sadd.s32 %s161, 1
      %s163 = scalar_select %p160, %s161, %s162
      %p166 = pneg %p160
      %p167 = scmp.eq.s32.totalorder %s15, 1
      %p168 = por %p166, %p167
      %p169 = scmp.ne.s32.totalorder %s161, %s164
      %p170 = scmp.eq.s32.totalorder %s15, 0
      %p171 = por %p169, %p170
      %p172 = scmp.ne.s32.totalorder %s161, %s164
      %p173 = scmp.eq.s32.totalorder %s20, 1
      %p174 = por %p172, %p173
      %p175 = scmp.ne.s32.totalorder %s164, %s165
      %p176 = scmp.eq.s32.totalorder %s20, 0
      %p177 = por %p175, %p176
      %p178 = scmp.ne.s32.totalorder %s164, %s165
      %p179 = scmp.eq.s32.totalorder %s21, 1
      %p180 = por %p178, %p179
      %p182 = scmp.ne.s32.totalorder %s165, %s181
      %p183 = scmp.eq.s32.totalorder %s21, 0
      %p184 = por %p182, %p183
      %p185 = scmp.le.s32.totalorder 1, %s15
      %p186 = scmp.lt.s32.totalorder %s15, 3
      %p187 = pnand %p185, %p186
      %p188 = pneg %p187
      // Predicated region
      $region9: #{tpu_custom_call.1} parent=5 // pred_check
        _
      $region10: #{tpu_custom_call.1} parent=5 // pred_check_branch
        %190 = sbr.rel (%p187) target = $region12
      $region11: #{tpu_custom_call.1} parent=5 // pred_region
        %s191 = ssub.s32 %s15, 1
        // Predicated region
        $region13: #{tpu_custom_call.1} parent=11 // pred_check
          %p192 = pneg %p62
        $region14: #{tpu_custom_call.1} parent=11 // pred_check_branch
          %194 = sbr.rel (%p192) target = $region16
        $region15: #{tpu_custom_call.1} parent=11 // pred_region
          %s196 = ssub.s32 2048, 2048
          %197 = vsyncadd [#allocation3], %s196
          %s198 = sshll.u32 [#allocation2], 4
          %s199 = int_to_ptr.vmem [resolvable:$true] %s198
          %204 = dma.hbm_to_vmem [thread:$0]  %s1, 2048, %s199, [#allocation3], 128, 128, 8
        $region16: #{tpu_custom_call.1} parent=11 // pred_fallthru
          _
        // Predicated region
        $region17: #{tpu_custom_call.1} parent=11 // pred_check
          %p205 = pneg %p83
        $region18: #{tpu_custom_call.1} parent=11 // pred_check_branch
          %207 = sbr.rel (%p205) target = $region20
        $region19: #{tpu_custom_call.1} parent=11 // pred_region
          _
        $region20: #{tpu_custom_call.1} parent=11 // pred_fallthru
          _
        // Predicated region
        $region21: #{tpu_custom_call.1} parent=11 // pred_check
          %p208 = pneg %p104
        $region22: #{tpu_custom_call.1} parent=11 // pred_check_branch
          %210 = sbr.rel (%p208) target = $region24
        $region23: #{tpu_custom_call.1} parent=11 // pred_region
          %s212 = ssub.s32 6144, 6144
          %213 = vsyncadd [#allocation5], %s212
          %s214 = sshll.u32 [#allocation4], 4
          %s215 = int_to_ptr.vmem [resolvable:$true] %s214
          %220 = dma.hbm_to_vmem [thread:$0]  %s3, 6144, %s215, [#allocation5], 384, 384, 24
        $region24: #{tpu_custom_call.1} parent=11 // pred_fallthru
          _
        // Predicated region
        $region25: #{tpu_custom_call.1} parent=11 // pred_check
          %p221 = pneg %p125
        $region26: #{tpu_custom_call.1} parent=11 // pred_check_branch
          %223 = sbr.rel (%p221) target = $region28
        $region27: #{tpu_custom_call.1} parent=11 // pred_region
          _
        $region28: #{tpu_custom_call.1} parent=11 // pred_fallthru
          _
      $region12: #{tpu_custom_call.1} parent=5 // pred_fallthru
        _
      %p224 = scmp.lt.s32.totalorder %s15, 2
      // Predicated region
      $region29: #{tpu_custom_call.1} parent=5 // pred_check
        %p225 = pneg %p224
      $region30: #{tpu_custom_call.1} parent=5 // pred_check_branch
        %227 = sbr.rel (%p225) target = $region32
      $region31: #{tpu_custom_call.1} parent=5 // pred_region
        // Predicated region
        $region33: #{tpu_custom_call.1} parent=31 // pred_check
          %p228 = pneg %p35
        $region34: #{tpu_custom_call.1} parent=31 // pred_check_branch
          %230 = sbr.rel (%p228) target = $region36
        $region35: #{tpu_custom_call.1} parent=31 // pred_region
          %p231 = scmp.lt.s32.totalorder %s15, 1
          %s232 = scalar_select %p231, %s15, 1
          %s233 = smul.addr %s232, 2
          %s234 = smul.addr %s233, 8
          %s235 = scalar_lea.vmem %s0, %s234
        $region36: #{tpu_custom_call.1} parent=31 // pred_fallthru
          _
      $region32: #{tpu_custom_call.1} parent=5 // pred_fallthru
        _
      %p236 = scmp.le.s32.totalorder 1, %s15
      %p237 = scmp.lt.s32.totalorder %s15, 3
      %p238 = pnand %p236, %p237
      %p239 = pneg %p238
      // Predicated region
      $region37: #{tpu_custom_call.1} parent=5 // pred_check
        _
      $region38: #{tpu_custom_call.1} parent=5 // pred_check_branch
        %241 = sbr.rel (%p238) target = $region40
      $region39: #{tpu_custom_call.1} parent=5 // pred_region
        %s242 = ssub.s32 %s15, 1
        // Predicated region
        $region41: #{tpu_custom_call.1} parent=39 // pred_check
          %p243 = pneg %p62
        $region42: #{tpu_custom_call.1} parent=39 // pred_check_branch
          %245 = sbr.rel (%p243) target = $region44
        $region43: #{tpu_custom_call.1} parent=39 // pred_region
          %246 = dma.done [#allocation3], 2048
        $region44: #{tpu_custom_call.1} parent=39 // pred_fallthru
          _
        // Predicated region
        $region45: #{tpu_custom_call.1} parent=39 // pred_check
          %p247 = pneg %p104
        $region46: #{tpu_custom_call.1} parent=39 // pred_check_branch
          %249 = sbr.rel (%p247) target = $region48
        $region47: #{tpu_custom_call.1} parent=39 // pred_region
          %250 = dma.done [#allocation5], 6144
        $region48: #{tpu_custom_call.1} parent=39 // pred_fallthru
          _
        %p251 = scmp.lt.s32.totalorder %s20, 1
        %s252 = scalar_select %p251, %s20, 1
        %s253 = smul.addr %s252, 2
        %s254 = smul.addr %s253, 8
        %s255 = scalar_lea.vmem %s0, %s254
        %p256 = pneg %p41
        %p257 = pneg %p38
        %p258 = pneg %p62
        %p259 = pneg %p59
        %p260 = pneg %p83
        %p261 = pneg %p80
        %p262 = pneg %p104
        %p263 = pneg %p101
        %p264 = pneg %p125
        %p265 = pneg %p122
        %p266 = pneg %p151
        %p267 = pneg %p148
        %p268 = scmp.lt.s32.totalorder %s20, 1
        %s269 = scalar_select %p268, %s20, 1
        %s270 = smul.addr %s269, 2
        %s271 = sadd.s32 1, %s270
        %s272 = smul.addr %s271, 8
        %s273 = scalar_lea.vmem %s5, %s272
        %p274 = pneg %p177
        %p275 = pneg %p174
        %p276 = scmp.lt.s32.totalorder %s20, 1
        %s277 = scalar_select %p276, %s20, 1
        %s278 = smul.addr %s277, 8
        %s279 = scalar_lea.vmem %s6, %s278
        %p280 = scmp.lt.s32.totalorder %s20, 1
        %s281 = scalar_select %p280, %s20, 1
        %s282 = smul.addr %s281, 2
        %s283 = smul.addr %s282, 8
        %s284 = scalar_lea.vmem %s0, %s283
        %p285 = scmp.lt.s32.totalorder %s20, 1
        %s286 = scalar_select %p285, %s20, 1
        %s287 = smul.addr %s286, 2
        %s288 = sadd.s32 1, %s287
        %s289 = smul.addr %s288, 8
        %s290 = scalar_lea.vmem %s5, %s289
        %p291 = scmp.lt.s32.totalorder %s20, 1
        %s292 = scalar_select %p291, %s20, 1
        %s293 = smul.addr %s292, 8
        %s294 = scalar_lea.vmem %s6, %s293
        %v295 = vld [vmem:[%s284] sm:$0xff]
        %v296 = vld [vmem:[%s284 + $0x8] sm:$0xff]
        %v297 = vld [vmem:[#allocation2] sm:$0xff]
        %v298 = vld [vmem:[#allocation2 + $0x8] sm:$0xff]
        %v299 = vld [vmem:[#allocation2 + $0x10] sm:$0xff]
        %v300 = vld [vmem:[#allocation2 + $0x18] sm:$0xff]
        %v301 = vld [vmem:[#allocation2 + $0x20] sm:$0xff]
        %v302 = vld [vmem:[#allocation2 + $0x28] sm:$0xff]
        %v303 = vld [vmem:[#allocation2 + $0x30] sm:$0xff]
        %v304 = vld [vmem:[#allocation2 + $0x38] sm:$0xff]
        %v305 = vld [vmem:[#allocation2 + $0x40] sm:$0xff]
        %v306 = vld [vmem:[#allocation2 + $0x48] sm:$0xff]
        %v307 = vld [vmem:[#allocation2 + $0x50] sm:$0xff]
        %v308 = vld [vmem:[#allocation2 + $0x58] sm:$0xff]
        %v309 = vld [vmem:[#allocation2 + $0x60] sm:$0xff]
        %v310 = vld [vmem:[#allocation2 + $0x68] sm:$0xff]
        %v311 = vld [vmem:[#allocation2 + $0x70] sm:$0xff]
        %v312 = vld [vmem:[#allocation2 + $0x78] sm:$0xff]
        %v313 = vld [vmem:[%s2] sm:$0x1]
        %v315 = vlaneseq
        %v316 = vshrl.u32 %v315, 7
        %v317 = vsub.s32 0, %v316
        %v318 = vrot.slane %v313, %v317
        %320 = vmatprep.subr.mxu0 0.0
        %321 = vmatpush1.msra.mxu0 %v297
        %322 = vmatprep.subr.mxu0 0.0
        %323 = vmatpush1.msra.mxu0 %v298
        %324 = vmatprep.subr.mxu0 0.0
        %325 = vmatpush1.msra.mxu0 %v299
        %326 = vmatprep.subr.mxu0 0.0
        %327 = vmatpush1.msra.mxu0 %v300
        %328 = vmatprep.subr.mxu0 0.0
        %329 = vmatpush1.msra.mxu0 %v301
        %330 = vmatprep.subr.mxu0 0.0
        %331 = vmatpush1.msra.mxu0 %v302
        %332 = vmatprep.subr.mxu0 0.0
        %333 = vmatpush1.msra.mxu0 %v303
        %334 = vmatprep.subr.mxu0 0.0
        %335 = vmatpush1.msra.mxu0 %v304
        %336 = vmatprep.subr.mxu0 0.0
        %337 = vmatpush1.msra.mxu0 %v305
        %338 = vmatprep.subr.mxu0 0.0
        %339 = vmatpush1.msra.mxu0 %v306
        %340 = vmatprep.subr.mxu0 0.0
        %341 = vmatpush1.msra.mxu0 %v307
        %342 = vmatprep.subr.mxu0 0.0
        %343 = vmatpush1.msra.mxu0 %v308
        %344 = vmatprep.subr.mxu0 0.0
        %345 = vmatpush1.msra.mxu0 %v309
        %346 = vmatprep.subr.mxu0 0.0
        %347 = vmatpush1.msra.mxu0 %v310
        %348 = vmatprep.subr.mxu0 0.0
        %349 = vmatpush1.msra.mxu0 %v311
        %350 = vmatprep.subr.mxu0 0.0
        %351 = vmatpush1.msra.mxu0 %v312
        %352 = vmatprep.subr.mxu0 0.0
        %353 = vmatpush1.msra.mxu0 0.0
        %354 = vmatprep.subr.mxu0 0.0
        %355 = vmatpush1.msra.mxu0 0.0
        %356 = vmatprep.subr.mxu0 0.0
        %357 = vmatpush1.msra.mxu0 0.0
        %358 = vmatprep.subr.mxu0 0.0
        %359 = vmatpush1.msra.mxu0 0.0
        %360 = vmatprep.subr.mxu0 0.0
        %361 = vmatpush1.msra.mxu0 0.0
        %362 = vmatprep.subr.mxu0 0.0
        %363 = vmatpush1.msra.mxu0 0.0
        %364 = vmatprep.subr.mxu0 0.0
        %365 = vmatpush1.msra.mxu0 0.0
        %366 = vmatprep.subr.mxu0 0.0
        %367 = vmatpush1.msra.mxu0 0.0
        %368 = vmatprep.subr.mxu0 0.0
        %369 = vmatpush1.msra.mxu0 0.0
        %370 = vmatprep.subr.mxu0 0.0
        %371 = vmatpush1.msra.mxu0 0.0
        %372 = vmatprep.subr.mxu0 0.0
        %373 = vmatpush1.msra.mxu0 0.0
        %374 = vmatprep.subr.mxu0 0.0
        %375 = vmatpush1.msra.mxu0 0.0
        %376 = vmatprep.subr.mxu0 0.0
        %377 = vmatpush1.msra.mxu0 0.0
        %378 = vmatprep.subr.mxu0 0.0
        %379 = vmatpush1.msra.mxu0 0.0
        %380 = vmatprep.subr.mxu0 0.0
        %381 = vmatpush1.msra.mxu0 0.0
        %382 = vmatprep.subr.mxu0 0.0
        %383 = vmatpush1.msra.mxu0 0.0
        %384 = vmatprep.mubr.f32.mxu0 0.0
        %385 = vmatmul.mubr.f32.gmra.mrb[0].mxu0 %v295
        %v386 = vpop.f32.mrb[0].mxu0
        %v387 = vadd.f32 %v318, %v386
        %v388 = vpop.f32.mrb[0].mxu0
        %389 = vdwg.mxu0
        %v390 = vmax.f32 %v387, 0.0
        %v391 = vld [vmem:[#allocation4] sm:$0xff]
        %v392 = vld [vmem:[#allocation4 + $0x8] sm:$0xff]
        %v393 = vld [vmem:[#allocation4 + $0x10] sm:$0xff]
        %v394 = vld [vmem:[#allocation4 + $0x18] sm:$0xff]
        %v395 = vld [vmem:[#allocation4 + $0x20] sm:$0xff]
        %v396 = vld [vmem:[#allocation4 + $0x28] sm:$0xff]
        %v397 = vld [vmem:[#allocation4 + $0x30] sm:$0xff]
        %v398 = vld [vmem:[#allocation4 + $0x38] sm:$0xff]
        %v399 = vld [vmem:[#allocation4 + $0x40] sm:$0xff]
        %v400 = vld [vmem:[#allocation4 + $0x48] sm:$0xff]
        %v401 = vld [vmem:[#allocation4 + $0x50] sm:$0xff]
        %v402 = vld [vmem:[#allocation4 + $0x58] sm:$0xff]
        %v403 = vld [vmem:[#allocation4 + $0x60] sm:$0xff]
        %v404 = vld [vmem:[#allocation4 + $0x68] sm:$0xff]
        %v405 = vld [vmem:[#allocation4 + $0x70] sm:$0xff]
        %v406 = vld [vmem:[#allocation4 + $0x78] sm:$0xff]
        %v407 = vld [vmem:[#allocation4 + $0x80] sm:$0xff]
        %v408 = vld [vmem:[#allocation4 + $0x88] sm:$0xff]
        %v409 = vld [vmem:[#allocation4 + $0x90] sm:$0xff]
        %v410 = vld [vmem:[#allocation4 + $0x98] sm:$0xff]
        %v411 = vld [vmem:[#allocation4 + $0xa0] sm:$0xff]
        %v412 = vld [vmem:[#allocation4 + $0xa8] sm:$0xff]
        %v413 = vld [vmem:[#allocation4 + $0xb0] sm:$0xff]
        %v414 = vld [vmem:[#allocation4 + $0xb8] sm:$0xff]
        %v415 = vld [vmem:[#allocation4 + $0xc0] sm:$0xff]
        %v416 = vld [vmem:[#allocation4 + $0xc8] sm:$0xff]
        %v417 = vld [vmem:[#allocation4 + $0xd0] sm:$0xff]
        %v418 = vld [vmem:[#allocation4 + $0xd8] sm:$0xff]
        %v419 = vld [vmem:[#allocation4 + $0xe0] sm:$0xff]
        %v420 = vld [vmem:[#allocation4 + $0xe8] sm:$0xff]
        %v421 = vld [vmem:[#allocation4 + $0xf0] sm:$0xff]
        %v422 = vld [vmem:[#allocation4 + $0xf8] sm:$0xff]
        %v423 = vld [vmem:[#allocation4 + $0x100] sm:$0xff]
        %v424 = vld [vmem:[#allocation4 + $0x108] sm:$0xff]
        %v425 = vld [vmem:[#allocation4 + $0x110] sm:$0xff]
        %v426 = vld [vmem:[#allocation4 + $0x118] sm:$0xff]
        %v427 = vld [vmem:[#allocation4 + $0x120] sm:$0xff]
        %v428 = vld [vmem:[#allocation4 + $0x128] sm:$0xff]
        %v429 = vld [vmem:[#allocation4 + $0x130] sm:$0xff]
        %v430 = vld [vmem:[#allocation4 + $0x138] sm:$0xff]
        %v431 = vld [vmem:[#allocation4 + $0x140] sm:$0xff]
        %v432 = vld [vmem:[#allocation4 + $0x148] sm:$0xff]
        %v433 = vld [vmem:[#allocation4 + $0x150] sm:$0xff]
        %v434 = vld [vmem:[#allocation4 + $0x158] sm:$0xff]
        %v435 = vld [vmem:[#allocation4 + $0x160] sm:$0xff]
        %v436 = vld [vmem:[#allocation4 + $0x168] sm:$0xff]
        %v437 = vld [vmem:[#allocation4 + $0x170] sm:$0xff]
        %v438 = vld [vmem:[#allocation4 + $0x178] sm:$0xff]
        %v439 = vld [vmem:[%s4] sm:$0x7]
        %v441 = vlaneseq
        %v442 = vshrl.u32 %v441, 7
        %v443 = vsub.s32 0, %v442
        %v444 = vrot.slane %v439, %v443
        %v445 = vlaneseq
        %v446 = vshrl.u32 %v445, 7
        %v447 = vsub.s32 1, %v446
        %v448 = vrot.slane %v439, %v447
        %v449 = vlaneseq
        %v450 = vshrl.u32 %v449, 7
        %v451 = vsub.s32 2, %v450
        %v452 = vrot.slane %v439, %v451
        %456 = vmatprep.subr.mxu0 %v392
        %457 = vmatpush1.msra.mxu0 %v391
        %458 = vmatprep.subr.mxu0 %v395
        %459 = vmatpush1.msra.mxu0 %v394
        %460 = vmatprep.subr.mxu0 %v398
        %461 = vmatpush1.msra.mxu0 %v397
        %462 = vmatprep.subr.mxu0 %v401
        %463 = vmatpush1.msra.mxu0 %v400
        %464 = vmatprep.subr.mxu0 %v404
        %465 = vmatpush1.msra.mxu0 %v403
        %466 = vmatprep.subr.mxu0 %v407
        %467 = vmatpush1.msra.mxu0 %v406
        %468 = vmatprep.subr.mxu0 %v410
        %469 = vmatpush1.msra.mxu0 %v409
        %470 = vmatprep.subr.mxu0 %v413
        %471 = vmatpush1.msra.mxu0 %v412
        %472 = vmatprep.subr.mxu0 %v416
        %473 = vmatpush1.msra.mxu0 %v415
        %474 = vmatprep.subr.mxu0 %v419
        %475 = vmatpush1.msra.mxu0 %v418
        %476 = vmatprep.subr.mxu0 %v422
        %477 = vmatpush1.msra.mxu0 %v421
        %478 = vmatprep.subr.mxu0 %v425
        %479 = vmatpush1.msra.mxu0 %v424
        %480 = vmatprep.subr.mxu0 %v428
        %481 = vmatpush1.msra.mxu0 %v427
        %482 = vmatprep.subr.mxu0 %v431
        %483 = vmatpush1.msra.mxu0 %v430
        %484 = vmatprep.subr.mxu0 %v434
        %485 = vmatpush1.msra.mxu0 %v433
        %486 = vmatprep.subr.mxu0 %v437
        %487 = vmatpush1.msra.mxu0 %v436
        %488 = vmatprep.subr.mxu0 0.0
        %489 = vmatpush1.msra.mxu0 0.0
        %490 = vmatprep.subr.mxu0 0.0
        %491 = vmatpush1.msra.mxu0 0.0
        %492 = vmatprep.subr.mxu0 0.0
        %493 = vmatpush1.msra.mxu0 0.0
        %494 = vmatprep.subr.mxu0 0.0
        %495 = vmatpush1.msra.mxu0 0.0
        %496 = vmatprep.subr.mxu0 0.0
        %497 = vmatpush1.msra.mxu0 0.0
        %498 = vmatprep.subr.mxu0 0.0
        %499 = vmatpush1.msra.mxu0 0.0
        %500 = vmatprep.subr.mxu0 0.0
        %501 = vmatpush1.msra.mxu0 0.0
        %502 = vmatprep.subr.mxu0 0.0
        %503 = vmatpush1.msra.mxu0 0.0
        %504 = vmatprep.subr.mxu0 0.0
        %505 = vmatpush1.msra.mxu0 0.0
        %506 = vmatprep.subr.mxu0 0.0
        %507 = vmatpush1.msra.mxu0 0.0
        %508 = vmatprep.subr.mxu0 0.0
        %509 = vmatpush1.msra.mxu0 0.0
        %510 = vmatprep.subr.mxu0 0.0
        %511 = vmatpush1.msra.mxu0 0.0
        %512 = vmatprep.subr.mxu0 0.0
        %513 = vmatpush1.msra.mxu0 0.0
        %514 = vmatprep.subr.mxu0 0.0
        %515 = vmatpush1.msra.mxu0 0.0
        %516 = vmatprep.subr.mxu0 0.0
        %517 = vmatpush1.msra.mxu0 0.0
        %518 = vmatprep.subr.mxu0 0.0
        %519 = vmatpush1.msra.mxu0 0.0
        %520 = vmatprep.mubr.f32.mxu0 0.0
        %521 = vmatmul.mubr.f32.gmra.mrb[0].mxu0 %v390
        %v522 = vpop.f32.mrb[0].mxu0
        %v523 = vadd.f32 %v444, %v522
        %v524 = vpop.f32.mrb[0].mxu0
        %v525 = vadd.f32 %v448, %v524
        %526 = vdwg.mxu0
        %527 = vmatprep.subr.mxu0 0.0
        %528 = vmatpush1.msra.mxu0 %v393
        %529 = vmatprep.subr.mxu0 0.0
        %530 = vmatpush1.msra.mxu0 %v396
        %531 = vmatprep.subr.mxu0 0.0
        %532 = vmatpush1.msra.mxu0 %v399
        %533 = vmatprep.subr.mxu0 0.0
        %534 = vmatpush1.msra.mxu0 %v402
        %535 = vmatprep.subr.mxu0 0.0
        %536 = vmatpush1.msra.mxu0 %v405
        %537 = vmatprep.subr.mxu0 0.0
        %538 = vmatpush1.msra.mxu0 %v408
        %539 = vmatprep.subr.mxu0 0.0
        %540 = vmatpush1.msra.mxu0 %v411
        %541 = vmatprep.subr.mxu0 0.0
        %542 = vmatpush1.msra.mxu0 %v414
        %543 = vmatprep.subr.mxu0 0.0
        %544 = vmatpush1.msra.mxu0 %v417
        %545 = vmatprep.subr.mxu0 0.0
        %546 = vmatpush1.msra.mxu0 %v420
        %547 = vmatprep.subr.mxu0 0.0
        %548 = vmatpush1.msra.mxu0 %v423
        %549 = vmatprep.subr.mxu0 0.0
        %550 = vmatpush1.msra.mxu0 %v426
        %551 = vmatprep.subr.mxu0 0.0
        %552 = vmatpush1.msra.mxu0 %v429
        %553 = vmatprep.subr.mxu0 0.0
        %554 = vmatpush1.msra.mxu0 %v432
        %555 = vmatprep.subr.mxu0 0.0
        %556 = vmatpush1.msra.mxu0 %v435
        %557 = vmatprep.subr.mxu0 0.0
        %558 = vmatpush1.msra.mxu0 %v438
        %559 = vmatprep.subr.mxu0 0.0
        %560 = vmatpush1.msra.mxu0 0.0
        %561 = vmatprep.subr.mxu0 0.0
        %562 = vmatpush1.msra.mxu0 0.0
        %563 = vmatprep.subr.mxu0 0.0
        %564 = vmatpush1.msra.mxu0 0.0
        %565 = vmatprep.subr.mxu0 0.0
        %566 = vmatpush1.msra.mxu0 0.0
        %567 = vmatprep.subr.mxu0 0.0
        %568 = vmatpush1.msra.mxu0 0.0
        %569 = vmatprep.subr.mxu0 0.0
        %570 = vmatpush1.msra.mxu0 0.0
        %571 = vmatprep.subr.mxu0 0.0
        %572 = vmatpush1.msra.mxu0 0.0
        %573 = vmatprep.subr.mxu0 0.0
        %574 = vmatpush1.msra.mxu0 0.0
        %575 = vmatprep.subr.mxu0 0.0
        %576 = vmatpush1.msra.mxu0 0.0
        %577 = vmatprep.subr.mxu0 0.0
        %578 = vmatpush1.msra.mxu0 0.0
        %579 = vmatprep.subr.mxu0 0.0
        %580 = vmatpush1.msra.mxu0 0.0
        %581 = vmatprep.subr.mxu0 0.0
        %582 = vmatpush1.msra.mxu0 0.0
        %583 = vmatprep.subr.mxu0 0.0
        %584 = vmatpush1.msra.mxu0 0.0
        %585 = vmatprep.subr.mxu0 0.0
        %586 = vmatpush1.msra.mxu0 0.0
        %587 = vmatprep.subr.mxu0 0.0
        %588 = vmatpush1.msra.mxu0 0.0
        %589 = vmatprep.subr.mxu0 0.0
        %590 = vmatpush1.msra.mxu0 0.0
        %591 = vmatprep.mubr.f32.mxu0 0.0
        %592 = vmatmul.mubr.f32.gmra.mrb[0].mxu0 %v390
        %v593 = vpop.f32.mrb[0].mxu0
        %v594 = vadd.f32 %v452, %v593
        %v595 = vpop.f32.mrb[0].mxu0
        %596 = vdwg.mxu0
        %v597 = vmul.f32 %v523, 1.442695
        %v598 = vpow.pop %v597
        %v599 = vmul.f32 %v296, %v598
        %v600 = vadd.f32 %v599, %v525
        %601 = vst [vmem:[%s290] sm:$0xff] %v600
        %vm602 = vcmask 7168
        %603 = vst.msk [vmem:[%s294] sm:$0xff] %vm602, %v594
        %p604 = scmp.lt.s32.totalorder %s20, 1
        %s605 = scalar_select %p604, %s20, 1
        %s606 = smul.addr %s605, 2
        %s607 = sadd.s32 1, %s606
        %s608 = smul.addr %s607, 8
        %s609 = scalar_lea.vmem %s5, %s608
        %p610 = scmp.lt.s32.totalorder %s20, 1
        %s611 = scalar_select %p610, %s20, 1
        %s612 = smul.addr %s611, 8
        %s613 = scalar_lea.vmem %s6, %s612
        // Predicated region
        $region49: #{tpu_custom_call.1} parent=39 // pred_check
          %p614 = pneg %p148
        $region50: #{tpu_custom_call.1} parent=39 // pred_check_branch
          %616 = sbr.rel (%p614) target = $region52
        $region51: #{tpu_custom_call.1} parent=39 // pred_region
          _
        $region52: #{tpu_custom_call.1} parent=39 // pred_fallthru
          _
        // Predicated region
        $region53: #{tpu_custom_call.1} parent=39 // pred_check
          %p617 = pneg %p174
        $region54: #{tpu_custom_call.1} parent=39 // pred_check_branch
          %619 = sbr.rel (%p617) target = $region56
        $region55: #{tpu_custom_call.1} parent=39 // pred_region
          _
        $region56: #{tpu_custom_call.1} parent=39 // pred_fallthru
          _
      $region40: #{tpu_custom_call.1} parent=5 // pred_fallthru
        _
      %p620 = scmp.le.s32.totalorder 2, %s15
      // Predicated region
      $region57: #{tpu_custom_call.1} parent=5 // pred_check
        %p621 = pneg %p620
      $region58: #{tpu_custom_call.1} parent=5 // pred_check_branch
        %623 = sbr.rel (%p621) target = $region60
      $region59: #{tpu_custom_call.1} parent=5 // pred_region
        %s624 = ssub.s32 %s15, 2
        // Predicated region
        $region61: #{tpu_custom_call.1} parent=59 // pred_check
          %p625 = pneg %p154
        $region62: #{tpu_custom_call.1} parent=59 // pred_check_branch
          %627 = sbr.rel (%p625) target = $region64
        $region63: #{tpu_custom_call.1} parent=59 // pred_region
          %p628 = scmp.lt.s32.totalorder %s21, 1
          %s629 = scalar_select %p628, %s21, 1
          %s630 = smul.addr %s629, 2
          %s631 = sadd.s32 1, %s630
          %s632 = smul.addr %s631, 8
          %s633 = scalar_lea.vmem %s5, %s632
        $region64: #{tpu_custom_call.1} parent=59 // pred_fallthru
          _
        // Predicated region
        $region65: #{tpu_custom_call.1} parent=59 // pred_check
          %p634 = pneg %p180
        $region66: #{tpu_custom_call.1} parent=59 // pred_check_branch
          %636 = sbr.rel (%p634) target = $region68
        $region67: #{tpu_custom_call.1} parent=59 // pred_region
          %p637 = scmp.lt.s32.totalorder %s21, 1
          %s638 = scalar_select %p637, %s21, 1
          %s639 = smul.addr %s638, 8
          %s640 = scalar_lea.vmem %s6, %s639
        $region68: #{tpu_custom_call.1} parent=59 // pred_fallthru
          _
      $region60: #{tpu_custom_call.1} parent=5 // pred_fallthru
        _
    $region6: #{tpu_custom_call.1} parent=1 // loop_footer
      %s19 = sadd.s32 1, %s15
    $region7: #{tpu_custom_call.1} parent=1 // loop_footer_branch
      %14 = sbr.rel target = $region3
    $region8: #{tpu_custom_call.1} parent=1 // loop_exit
      _
    %641 = vsyncpa [#allocation3], 1
    %s642 = scalar_lea.sflag [#allocation3], 1
    %643 = vsyncpa %s642, 1
    %644 = vsyncpa [#allocation5], 1

</llo_original>
